<compile_context>
chip_gen: v7x
topology: tpu7x:2x2x1
jax: 0.10.0
libtpu: 0.0.40
codegen_flags: <defaults>
</compile_context>

<pallas_src>
import jax
import jax.numpy as jnp
from jax.experimental import pallas as pl
from jax.experimental.pallas import tpu as pltpu


def identity(x):
    """IdentityModule.forward: return inputs unchanged (the zero-cost path)."""
    return x


def _copy_kernel(x_ref, o_ref):
    # Hot path of nn.Identity-as-a-copy: HBM -> VMEM -> HBM streaming memcpy.
    o_ref[...] = x_ref[...]


def _sublane_multiple(dtype) -> int:
    itemsize = jnp.dtype(dtype).itemsize
    return {4: 8, 2: 16, 1: 32}.get(itemsize, 8)


def identity_pallas(x, *, lane_cap: int = 2048,
                    target_block_bytes: int = 2 * 1024 * 1024):
    """Explicit identity copy through a Pallas TPU kernel.

    Preserves shape, dtype and values exactly.  Cost is one HBM read plus one
    HBM write of the array; no padding / slicing / casting passes.
    """
    n = x.size
    if n == 0:
        return x

    orig_shape = x.shape
    itemsize = jnp.dtype(x.dtype).itemsize
    cost = pl.CostEstimate(flops=0, transcendentals=0,
                           bytes_accessed=2 * n * itemsize)

    if n % 128 != 0:
        # Awkward element counts: copy the whole array as one block whose shape
        # equals the full array extent (exempt from the (8,128) tiling rule).
        # TODO(synk): for very large arrays with n % 128 != 0, split into a
        # 128-aligned body + small tail instead of one full-array block.
        x2d = x.reshape(1, n)
        out2d = pl.pallas_call(
            _copy_kernel,
            out_shape=jax.ShapeDtypeStruct((1, n), x.dtype),
            grid_spec=pltpu.PrefetchScalarGridSpec(
                num_scalar_prefetch=0,
                grid=(1,),
                in_specs=[pl.BlockSpec((1, n), lambda i: (0, 0))],
                out_specs=pl.BlockSpec((1, n), lambda i: (0, 0)),
            ),
            compiler_params=pltpu.CompilerParams(
                dimension_semantics=("arbitrary",)),
            cost_estimate=cost,
        )(x2d)
        return out2d.reshape(orig_shape)

    # Lane-dense path: largest lane width (multiple of 128, <= lane_cap) that
    # divides n exactly, so no padding is ever needed.
    cols = 128
    for c in range(lane_cap, 127, -128):
        if n % c == 0:
            cols = c
            break
    rows = n // cols
    x2d = x.reshape(rows, cols)

    sub = _sublane_multiple(x.dtype)
    if rows < sub:
        block_rows = rows  # full-extent block is always legal
    else:
        block_rows = max(sub, min(rows, target_block_bytes // (cols * itemsize)))
        block_rows = (block_rows // sub) * sub  # keep (sublane,128)-tileable
        # Prefer >= 2 grid steps so the copy shards across both TensorCores on
        # v7x (and across megacore on v5e/v6e).
        if block_rows >= rows and rows >= 2 * sub:
            block_rows = max(sub, (((rows + 1) // 2) // sub) * sub)

    num_blocks = pl.cdiv(rows, block_rows)  # remainder block is auto-masked

    out2d = pl.pallas_call(
        _copy_kernel,
        out_shape=jax.ShapeDtypeStruct((rows, cols), x.dtype),
        grid_spec=pltpu.PrefetchScalarGridSpec(
            num_scalar_prefetch=0,
            grid=(num_blocks,),
            in_specs=[pl.BlockSpec((block_rows, cols), lambda i: (i, 0))],
            out_specs=pl.BlockSpec((block_rows, cols), lambda i: (i, 0)),
        ),
        compiler_params=pltpu.CompilerParams(
            dimension_semantics=("parallel",)),
        cost_estimate=cost,
    )(x2d)
    return out2d.reshape(orig_shape)


if __name__ == "__main__":
    key = jax.random.PRNGKey(0)

    # Small NCHW-like activation consistent with a typical conv-model forward.
    x = jax.random.normal(key, (2, 4, 16, 16), dtype=jnp.float32)

    ident = jax.jit(identity_pallas)
    y = ident(x)
    jax.block_until_ready(y)
    assert y.shape == x.shape and y.dtype == x.dtype
    assert bool(jnp.array_equal(y, x)), "identity mismatch (lane-dense path)"

    # Exercise the awkward-size fallback path (element count not % 128).
    x_small = jax.random.normal(jax.random.PRNGKey(0), (3, 5, 7), dtype=jnp.float32)
    y_small = identity_pallas(x_small)
    jax.block_until_ready(y_small)
    assert y_small.shape == x_small.shape and y_small.dtype == x_small.dtype
    assert bool(jnp.array_equal(y_small, x_small)), "identity mismatch (fallback path)"

    print("KERNEL_OK")
</pallas_src>

<mosaic_0001>
module attributes {stable_mosaic.version = 11 : i64} {
  func.func @_copy_kernel(%arg0: i32, %arg1: memref<1x2048xf32, #tpu.memory_space<vmem>>, %arg2: memref<1x2048xf32, #tpu.memory_space<vmem>>) attributes {dimension_semantics = [#tpu.dimension_semantics<parallel>], iteration_bounds = array<i64: 1>, scalar_prefetch = 0 : i64, scratch_operands = 0 : i64, tpu.core_type = #tpu.core_type<tc>, window_params = [{transform_indices = @transform_0, window_bounds = array<i64: 1, 2048>}, {transform_indices = @transform_1, window_bounds = array<i64: 1, 2048>}]} {
    %c0 = arith.constant 0 : index
    %c0_0 = arith.constant 0 : index
    %0 = vector.load %arg1[%c0, %c0_0] : memref<1x2048xf32, #tpu.memory_space<vmem>>, vector<1x2048xf32>
    %c0_1 = arith.constant 0 : index
    %c0_2 = arith.constant 0 : index
    %1 = vector.load %arg2[%c0_1, %c0_2] : memref<1x2048xf32, #tpu.memory_space<vmem>>, vector<1x2048xf32>
    tpu.vector_store %arg2[%c0_1, %c0_2], %0 {strides = array<i32>} : memref<1x2048xf32, #tpu.memory_space<vmem>>, vector<1x2048xf32>,
    return
  }
  func.func @transform_0(%arg0: i32) -> (i32, i32) {
    %c0_i32 = arith.constant 0 : i32
    %c0_i32_0 = arith.constant 0 : i32
    return %arg0, %c0_i32 : i32, i32
  }
  func.func @transform_1(%arg0: i32) -> (i32, i32) {
    %c0_i32 = arith.constant 0 : i32
    %c0_i32_0 = arith.constant 0 : i32
    return %arg0, %c0_i32 : i32, i32
  }
}

</mosaic_0001>

<llo_original>
// kernel: identity_pallas.1
$region0: #{identity_pallas.1}
  #allocation0 [shape = 'u32[]', space=smem, size = 0x4, offset = 0x4, fixed_abs, tag = 'smem constant byte address 0x4 - core index']
  #allocation1 [shape = 'u32[144,128]{1,0:T(1,128)}', space=vmem, size = 0x12000, scoped, tag = 'internal scratch']
  %s0 = inlined_call_operand.vmem [shape: f32[1,2048], index: 0, kind: input, shape index: {}]
  %s1 = inlined_call_operand.vmem [shape: f32[1,2048], index: 1, kind: output, shape index: {}]
  %s2 = sld [smem:[#allocation0]]
  $region14: #{identity_pallas.1} parent=0
    _
  %s4 = ssub.s32 1, %s2
  %s5 = scalar_select 0, %s4, %s2
  // Predicated region
  $region2: #{identity_pallas.1} parent=0 // pred_check
    _
  $region3: #{identity_pallas.1} parent=0 // pred_check_branch
    %7 = sbr.rel (0) target = $region5
  $region4: #{identity_pallas.1} parent=0 // pred_region
    _
  $region5: #{identity_pallas.1} parent=0 // pred_fallthru
    _
  %v8 = vld [vmem:[%s0] sm:$0xff]
  %v9 = vld [vmem:[%s0 + $0x8] sm:$0xff]
  %10 = vst [vmem:[%s1] sm:$0xff] %v8
  %11 = vst [vmem:[%s1 + $0x8] sm:$0xff] %v9
  // Predicated region
  $region6: #{identity_pallas.1} parent=0 // pred_check
    _
  $region7: #{identity_pallas.1} parent=0 // pred_check_branch
    %13 = sbr.rel (0) target = $region9
  $region8: #{identity_pallas.1} parent=0 // pred_region
    _
  $region9: #{identity_pallas.1} parent=0 // pred_fallthru
    _
  // Predicated region
  $region10: #{identity_pallas.1} parent=0 // pred_check
    _
  $region11: #{identity_pallas.1} parent=0 // pred_check_branch
    %15 = sbr.rel (0) target = $region13
  $region12: #{identity_pallas.1} parent=0 // pred_region
    _
  $region13: #{identity_pallas.1} parent=0 // pred_fallthru
    _

</llo_original>
